<compile_context>
chip_gen: v7x
topology: tpu7x:2x2x1
jax: 0.10.0
libtpu: 0.0.40
codegen_flags: <defaults>
</compile_context>

<pallas_src>
import jax
import jax.numpy as jnp
from jax.experimental import pallas as pl
from jax.experimental.pallas import tpu as pltpu

OUT_FEATURES = 13          # 10 betas + 3 cam
_H_LANES = 128             # hidden dim padded to full lanes
_VMEM_TILE_BUDGET = 16 * 1024 * 1024   # bytes for double-buffered row tiles
_VMEM_LIMIT_BYTES = 32 * 1024 * 1024   # scoped VMEM request (safe on v5e/v6e/v7x)
_TM_CAP = 8192             # absolute row-tile cap


def fc_head_kernel(x_ref, w1_ref, b1_ref, w2_ref, bias2_ref, out_ref):
    # hidden = relu(x @ W1^T + b1)   (f32 accumulate / f32 VPU math)
    h = jnp.dot(x_ref[...], w1_ref[...], preferred_element_type=jnp.float32)
    h = jnp.maximum(h + b1_ref[...], 0.0)
    # out = hidden @ W2^T + (b2 + [init_betas | init_cam])   -> [tm, 13]
    out = jnp.dot(h.astype(w2_ref.dtype), w2_ref[...],
                  preferred_element_type=jnp.float32) + bias2_ref[...]
    out_ref[...] = out.astype(out_ref.dtype)


def _choose_tiling(BT, C):
    """Return (tm, BT_pad).  Large tiles; avoid row padding when possible."""
    BT8 = ((BT + 7) // 8) * 8
    # double-buffered f32 bytes per row for the pipelined streams (x + out)
    per_row = 2 * 4 * (C + OUT_FEATURES)
    cap = min(_TM_CAP, max(512, (_VMEM_TILE_BUDGET // per_row) // 8 * 8))

    if BT8 <= cap:
        # Whole batch in one step: no per-step overhead multiplication on
        # single-TensorCore chips (v5e/v6e).
        return BT8, BT8

    n_min = pl.cdiv(BT8, cap)
    # Prefer an even step count that tiles BT8 exactly (v7x: 2 TCs, balanced,
    # and no wrapper-side jnp.pad copy of feats).
    for steps in range(n_min, n_min + 16):
        if steps % 2 == 0 and BT8 % steps == 0 and (BT8 // steps) % 8 == 0:
            return BT8 // steps, BT8
    for steps in range(n_min, n_min + 16):
        if BT8 % steps == 0 and (BT8 // steps) % 8 == 0:
            return BT8 // steps, BT8
    # Fallback: ragged tail -> minimal row padding (padded rows sliced off).
    steps = n_min + (n_min % 2)
    tm = (pl.cdiv(BT8, steps) + 7) // 8 * 8
    return tm, steps * tm


def fc_head_forward(feats, w1_t, b1, w2_t, b2, init_betas, init_cam, *,
                    compute_dtype=jnp.float32, tm=None):
    """feats: [BT, JE].  Returns (pred_betas [1,BT,10], pred_cam [1,BT,3]).

    compute_dtype=jnp.bfloat16 halves the feats/weight HBM read streams and
    uses the MXU at its native bf16 rate (recommended on v6e/v7x); the
    accumulators, relu and bias math remain f32.
    """
    BT, C = feats.shape
    H = w1_t.shape[1]
    H_pad = max(_H_LANES, pl.cdiv(H, _H_LANES) * _H_LANES)

    if tm is None:
        tm, BT_pad = _choose_tiling(BT, C)
    else:
        tm = max(8, (tm // 8) * 8)
        BT_pad = pl.cdiv(BT, tm) * tm

    x = feats.astype(compute_dtype)
    if BT_pad != BT:
        # Only hit when no exact tiling exists (ragged tail); small pad.
        x = jnp.pad(x, ((0, BT_pad - BT), (0, 0)))

    # W1^T padded to H_pad hidden lanes; padded columns are zero -> padded
    # hidden lanes are relu(0 + 0) = 0 and contribute nothing downstream.
    w1_p = jnp.pad(w1_t.astype(jnp.float32), ((0, 0), (0, H_pad - H))).astype(compute_dtype)
    b1_row = jnp.pad(b1.reshape(1, H).astype(jnp.float32), ((0, 0), (0, H_pad - H)))

    # W2^T padded along the (contracted) hidden dim only; output stays 13-wide.
    w2_p = jnp.pad(w2_t.astype(jnp.float32), ((0, H_pad - H), (0, 0))).astype(compute_dtype)

    # Fold b2 + [init_betas | init_cam] into one 13-wide bias row.
    init_row = jnp.concatenate(
        [init_betas.reshape(10), init_cam.reshape(3)]).astype(jnp.float32)
    bias2_row = (b2.reshape(1, OUT_FEATURES).astype(jnp.float32) + init_row[None, :])

    out = pl.pallas_call(
        fc_head_kernel,
        out_shape=jax.ShapeDtypeStruct((BT_pad, OUT_FEATURES), jnp.float32),
        grid_spec=pl.GridSpec(
            grid=(BT_pad // tm,),
            in_specs=[
                pl.BlockSpec((tm, C), lambda i: (i, 0)),               # feats tile
                pl.BlockSpec((C, H_pad), lambda i: (0, 0)),            # W1^T (full)
                pl.BlockSpec((1, H_pad), lambda i: (0, 0)),            # b1 row
                pl.BlockSpec((H_pad, OUT_FEATURES), lambda i: (0, 0)), # W2^T (full)
                pl.BlockSpec((1, OUT_FEATURES), lambda i: (0, 0)),     # b2 + init row
            ],
            out_specs=pl.BlockSpec((tm, OUT_FEATURES), lambda i: (i, 0)),
        ),
        compiler_params=pltpu.CompilerParams(
            dimension_semantics=("parallel",),
            vmem_limit_bytes=_VMEM_LIMIT_BYTES,
        ),
    )(x, w1_p, b1_row, w2_p, bias2_row)

    off = out[:BT] if BT_pad != BT else out
    # Reproduce PyTorch broadcasting: [BT,K] + [1,1,K] -> [1,BT,K].
    pred_betas = off[:, :10][None]   # [1, BT, 10]
    pred_cam = off[:, 10:][None]     # [1, BT, 3]
    return pred_betas, pred_cam


def _reference(feats, w1_t, b1, w2_t, b2, init_betas, init_cam):
    h = jnp.maximum(feats @ w1_t + b1, 0.0)
    off = h @ w2_t + b2
    pred_betas = off[:, :10] + init_betas.reshape(1, 1, 10)
    pred_cam = off[:, 10:] + init_cam.reshape(1, 1, 3)
    return pred_betas, pred_cam


if __name__ == "__main__":
    # Small, module-consistent shapes.
    BT = 16                  # batch*time rows
    context_features = 32    # JE
    hidden_features = 32

    key = jax.random.PRNGKey(0)
    k_x, k_w1, k_b1, k_w2, k_b2, k_cam, k_betas = jax.random.split(key, 7)

    feats = jax.random.normal(k_x, (BT, context_features), dtype=jnp.float32)

    # Linear1: weight [hidden, context], bias [hidden] -> stored transposed [context, hidden]
    w1_t = (jax.random.normal(k_w1, (context_features, hidden_features), jnp.float32)
            * (1.0 / jnp.sqrt(context_features)))
    b1 = jax.random.normal(k_b1, (hidden_features,), jnp.float32) * 0.01
    # Linear2: weight [13, hidden] with xavier_uniform gain=0.02 -> transposed [hidden, 13]
    limit = 0.02 * jnp.sqrt(6.0 / (hidden_features + 13))
    w2_t = jax.random.uniform(k_w2, (hidden_features, 13), jnp.float32,
                              minval=-limit, maxval=limit)
    b2 = jax.random.normal(k_b2, (13,), jnp.float32) * 0.01

    # TODO(synk): mean_params come from an .npz checkpoint in the original
    # module; synthesize deterministic init_cam [1,1,3] / init_betas [1,1,10].
    init_cam = jax.random.normal(k_cam, (1, 1, 3), jnp.float32) * 0.1
    init_betas = jax.random.normal(k_betas, (1, 1, 10), jnp.float32) * 0.1

    ref_betas, ref_cam = _reference(feats, w1_t, b1, w2_t, b2, init_betas, init_cam)

    # f32 path (exact module semantics).
    pred_betas, pred_cam = fc_head_forward(
        feats, w1_t, b1, w2_t, b2, init_betas, init_cam)
    jax.block_until_ready((pred_betas, pred_cam))
    assert pred_betas.shape == (1, BT, 10) and pred_cam.shape == (1, BT, 3)
    assert jnp.allclose(pred_betas, ref_betas, atol=1e-5, rtol=1e-5)
    assert jnp.allclose(pred_cam, ref_cam, atol=1e-5, rtol=1e-5)

    # bf16 read-side path (recommended on v6e/v7x); accumulation stays f32.
    pb_bf16, pc_bf16 = fc_head_forward(
        feats, w1_t, b1, w2_t, b2, init_betas, init_cam,
        compute_dtype=jnp.bfloat16)
    jax.block_until_ready((pb_bf16, pc_bf16))
    assert jnp.allclose(pb_bf16, ref_betas, atol=1e-2, rtol=1e-2)
    assert jnp.allclose(pc_bf16, ref_cam, atol=1e-2, rtol=1e-2)

    # Ragged row count (not a multiple of 8) -> exercises the pad fallback.
    BT2 = 20
    feats2 = jax.random.normal(jax.random.PRNGKey(1), (BT2, context_features), jnp.float32)
    pb2, pc2 = fc_head_forward(feats2, w1_t, b1, w2_t, b2, init_betas, init_cam)
    jax.block_until_ready((pb2, pc2))
    rb2, rc2 = _reference(feats2, w1_t, b1, w2_t, b2, init_betas, init_cam)
    assert pb2.shape == (1, BT2, 10) and pc2.shape == (1, BT2, 3)
    assert jnp.allclose(pb2, rb2, atol=1e-5, rtol=1e-5)
    assert jnp.allclose(pc2, rc2, atol=1e-5, rtol=1e-5)

    print("KERNEL_OK")
</pallas_src>

<mosaic_0001>
module attributes {stable_mosaic.version = 11 : i64} {
  func.func @fc_head_kernel(%arg0: i32, %arg1: memref<16x32xf32, #tpu.memory_space<vmem>>, %arg2: memref<32x128xf32, #tpu.memory_space<vmem>>, %arg3: memref<1x128xf32, #tpu.memory_space<vmem>>, %arg4: memref<128x13xf32, #tpu.memory_space<vmem>>, %arg5: memref<1x13xf32, #tpu.memory_space<vmem>>, %arg6: memref<16x13xf32, #tpu.memory_space<vmem>>) attributes {dimension_semantics = [#tpu.dimension_semantics<parallel>], iteration_bounds = array<i64: 1>, scalar_prefetch = 0 : i64, scratch_operands = 0 : i64, tpu.core_type = #tpu.core_type<tc>, window_params = [{transform_indices = @transform_0, window_bounds = array<i64: 16, 32>}, {pipeline_mode = #tpu.pipeline_mode<synchronous>, transform_indices = @transform_1, window_bounds = array<i64: 32, 128>}, {pipeline_mode = #tpu.pipeline_mode<synchronous>, transform_indices = @transform_2, window_bounds = array<i64: 1, 128>}, {pipeline_mode = #tpu.pipeline_mode<synchronous>, transform_indices = @transform_3, window_bounds = array<i64: 128, 13>}, {pipeline_mode = #tpu.pipeline_mode<synchronous>, transform_indices = @transform_4, window_bounds = array<i64: 1, 13>}, {transform_indices = @transform_5, window_bounds = array<i64: 16, 13>}]} {
    %c0 = arith.constant 0 : index
    %c0_0 = arith.constant 0 : index
    %0 = vector.load %arg1[%c0, %c0_0] : memref<16x32xf32, #tpu.memory_space<vmem>>, vector<16x32xf32>
    %c0_1 = arith.constant 0 : index
    %c0_2 = arith.constant 0 : index
    %1 = vector.load %arg2[%c0_1, %c0_2] : memref<32x128xf32, #tpu.memory_space<vmem>>, vector<32x128xf32>
    %cst = arith.constant dense<0.000000e+00> : vector<16x128xf32>
    %2 = tpu.matmul %0, %1, %cst {dimension_numbers = #tpu.dot_dimension_numbers<[1], [0], [0], [1], [0, 0, 1, 1], [], []>} : vector<16x32xf32>, vector<32x128xf32>, vector<16x128xf32> -> vector<16x128xf32>
    %c0_3 = arith.constant 0 : index
    %c0_4 = arith.constant 0 : index
    %3 = vector.load %arg3[%c0_3, %c0_4] : memref<1x128xf32, #tpu.memory_space<vmem>>, vector<1x128xf32>
    %4 = vector.broadcast %3 : vector<1x128xf32> to vector<16x128xf32>
    %5 = arith.addf %2, %4 : vector<16x128xf32>
    %cst_5 = arith.constant 0.000000e+00 : f32
    %6 = vector.broadcast %cst_5 : f32 to vector<16x128xf32>
    %7 = arith.maximumf %5, %6 : vector<16x128xf32>
    %c0_6 = arith.constant 0 : index
    %c0_7 = arith.constant 0 : index
    %8 = vector.load %arg4[%c0_6, %c0_7] : memref<128x13xf32, #tpu.memory_space<vmem>>, vector<128x13xf32>
    %cst_8 = arith.constant dense<0.000000e+00> : vector<16x13xf32>
    %9 = tpu.matmul %7, %8, %cst_8 {dimension_numbers = #tpu.dot_dimension_numbers<[1], [0], [0], [1], [0, 0, 1, 1], [], []>} : vector<16x128xf32>, vector<128x13xf32>, vector<16x13xf32> -> vector<16x13xf32>
    %c0_9 = arith.constant 0 : index
    %c0_10 = arith.constant 0 : index
    %10 = vector.load %arg5[%c0_9, %c0_10] : memref<1x13xf32, #tpu.memory_space<vmem>>, vector<1x13xf32>
    %11 = vector.broadcast %10 : vector<1x13xf32> to vector<16x13xf32>
    %12 = arith.addf %9, %11 : vector<16x13xf32>
    %c0_11 = arith.constant 0 : index
    %c0_12 = arith.constant 0 : index
    %13 = vector.load %arg6[%c0_11, %c0_12] : memref<16x13xf32, #tpu.memory_space<vmem>>, vector<16x13xf32>
    tpu.vector_store %arg6[%c0_11, %c0_12], %12 {strides = array<i32>} : memref<16x13xf32, #tpu.memory_space<vmem>>, vector<16x13xf32>,
    return
  }
  func.func @transform_0(%arg0: i32) -> (i32, i32) {
    %c0_i32 = arith.constant 0 : i32
    %c0_i32_0 = arith.constant 0 : i32
    return %arg0, %c0_i32 : i32, i32
  }
  func.func @transform_1(%arg0: i32) -> (i32, i32) {
    %c0_i32 = arith.constant 0 : i32
    %c0_i32_0 = arith.constant 0 : i32
    %c0_i32_1 = arith.constant 0 : i32
    return %c0_i32, %c0_i32_0 : i32, i32
  }
  func.func @transform_2(%arg0: i32) -> (i32, i32) {
    %c0_i32 = arith.constant 0 : i32
    %c0_i32_0 = arith.constant 0 : i32
    %c0_i32_1 = arith.constant 0 : i32
    return %c0_i32, %c0_i32_0 : i32, i32
  }
  func.func @transform_3(%arg0: i32) -> (i32, i32) {
    %c0_i32 = arith.constant 0 : i32
    %c0_i32_0 = arith.constant 0 : i32
    %c0_i32_1 = arith.constant 0 : i32
    return %c0_i32, %c0_i32_0 : i32, i32
  }
  func.func @transform_4(%arg0: i32) -> (i32, i32) {
    %c0_i32 = arith.constant 0 : i32
    %c0_i32_0 = arith.constant 0 : i32
    %c0_i32_1 = arith.constant 0 : i32
    return %c0_i32, %c0_i32_0 : i32, i32
  }
  func.func @transform_5(%arg0: i32) -> (i32, i32) {
    %c0_i32 = arith.constant 0 : i32
    %c0_i32_0 = arith.constant 0 : i32
    return %arg0, %c0_i32 : i32, i32
  }
}

</mosaic_0001>

<llo_original>
// kernel: tpu_custom_call.1
$region0: #{tpu_custom_call.1}
  #allocation0 [shape = 'u32[]', space=smem, size = 0x4, offset = 0x4, fixed_abs, tag = 'smem constant byte address 0x4 - core index']
  #allocation1 [shape = 'u32[144,128]{1,0:T(1,128)}', space=vmem, size = 0x12000, scoped, tag = 'internal scratch']
  %s0 = inlined_call_operand.vmem [shape: f32[16,32], index: 0, kind: input, shape index: {}]
  %s1 = inlined_call_operand.vmem [shape: f32[32,128], index: 1, kind: input, shape index: {}]
  %s2 = inlined_call_operand.vmem [shape: f32[1,128], index: 2, kind: input, shape index: {}]
  %s3 = inlined_call_operand.vmem [shape: f32[128,13], index: 3, kind: input, shape index: {}]
  %s4 = inlined_call_operand.vmem [shape: f32[1,13], index: 4, kind: input, shape index: {}]
  %s5 = inlined_call_operand.hbm [shape: f32[16,13], index: 5, kind: output, shape index: {}]
  %s6 = sld [smem:[#allocation0]]
  $region30: #{tpu_custom_call.1} parent=0
    _
  %s8 = ssub.s32 1, %s6
  %s9 = scalar_select 0, %s8, %s6
  $region1: #{tpu_custom_call.1} parent=0
    #allocation2 [shape = 'u8[8192]{0}', space=vmem, size = 0x2000, scoped, tag = 'output window, operand 0, single buffered']
    #allocation3 [shape = 's32[1]{0}', space=sflag, size = 0x4, scoped, tag = 'scoped memory for tpu_custom_call.1']
    %10 = vsyncpa [#allocation3], 0
    // Predicated region
    $region2: #{tpu_custom_call.1} parent=1 // pred_check
      _
    $region3: #{tpu_custom_call.1} parent=1 // pred_check_branch
      %12 = sbr.rel (0) target = $region5
    $region4: #{tpu_custom_call.1} parent=1 // pred_region
      _
    $region5: #{tpu_custom_call.1} parent=1 // pred_fallthru
      _
    // Predicated region
    $region6: #{tpu_custom_call.1} parent=1 // pred_check
      _
    $region7: #{tpu_custom_call.1} parent=1 // pred_check_branch
      %14 = sbr.rel (0) target = $region9
    $region8: #{tpu_custom_call.1} parent=1 // pred_region
      _
    $region9: #{tpu_custom_call.1} parent=1 // pred_fallthru
      _
    // Predicated region
    $region10: #{tpu_custom_call.1} parent=1 // pred_check
      _
    $region11: #{tpu_custom_call.1} parent=1 // pred_check_branch
      %16 = sbr.rel (0) target = $region13
    $region12: #{tpu_custom_call.1} parent=1 // pred_region
      _
    $region13: #{tpu_custom_call.1} parent=1 // pred_fallthru
      _
    // Predicated region
    $region14: #{tpu_custom_call.1} parent=1 // pred_check
      _
    $region15: #{tpu_custom_call.1} parent=1 // pred_check_branch
      %18 = sbr.rel (0) target = $region17
    $region16: #{tpu_custom_call.1} parent=1 // pred_region
      _
    $region17: #{tpu_custom_call.1} parent=1 // pred_fallthru
      _
    // Predicated region
    $region18: #{tpu_custom_call.1} parent=1 // pred_check
      _
    $region19: #{tpu_custom_call.1} parent=1 // pred_check_branch
      %20 = sbr.rel (0) target = $region21
    $region20: #{tpu_custom_call.1} parent=1 // pred_region
      _
    $region21: #{tpu_custom_call.1} parent=1 // pred_fallthru
      _
    %v21 = vld [vmem:[%s0] sm:$0xff]
    %v22 = vld [vmem:[%s0 + $0x8] sm:$0xff]
    %v23 = vld [vmem:[%s1] sm:$0xff]
    %v24 = vld [vmem:[%s1 + $0x8] sm:$0xff]
    %v25 = vld [vmem:[%s1 + $0x10] sm:$0xff]
    %v26 = vld [vmem:[%s1 + $0x18] sm:$0xff]
    %v27 = vld [vmem:[%s2] sm:$0x1]
    %v29 = vlaneseq
    %v30 = vshrl.u32 %v29, 7
    %v31 = vsub.s32 0, %v30
    %v32 = vrot.slane %v27, %v31
    %vm34 = vcmask 261120
    %v36 = vsel %vm34, %v21, 0
    %v39 = vsel %vm34, %v22, 0
    %41 = vmatprep.subr.mxu0 0.0
    %42 = vmatpush1.msra.mxu0 %v23
    %43 = vmatprep.subr.mxu0 0.0
    %44 = vmatpush1.msra.mxu0 %v24
    %45 = vmatprep.subr.mxu0 0.0
    %46 = vmatpush1.msra.mxu0 %v25
    %47 = vmatprep.subr.mxu0 0.0
    %48 = vmatpush1.msra.mxu0 %v26
    %49 = vmatprep.subr.mxu0 0.0
    %50 = vmatpush1.msra.mxu0 0.0
    %51 = vmatprep.subr.mxu0 0.0
    %52 = vmatpush1.msra.mxu0 0.0
    %53 = vmatprep.subr.mxu0 0.0
    %54 = vmatpush1.msra.mxu0 0.0
    %55 = vmatprep.subr.mxu0 0.0
    %56 = vmatpush1.msra.mxu0 0.0
    %57 = vmatprep.subr.mxu0 0.0
    %58 = vmatpush1.msra.mxu0 0.0
    %59 = vmatprep.subr.mxu0 0.0
    %60 = vmatpush1.msra.mxu0 0.0
    %61 = vmatprep.subr.mxu0 0.0
    %62 = vmatpush1.msra.mxu0 0.0
    %63 = vmatprep.subr.mxu0 0.0
    %64 = vmatpush1.msra.mxu0 0.0
    %65 = vmatprep.subr.mxu0 0.0
    %66 = vmatpush1.msra.mxu0 0.0
    %67 = vmatprep.subr.mxu0 0.0
    %68 = vmatpush1.msra.mxu0 0.0
    %69 = vmatprep.subr.mxu0 0.0
    %70 = vmatpush1.msra.mxu0 0.0
    %71 = vmatprep.subr.mxu0 0.0
    %72 = vmatpush1.msra.mxu0 0.0
    %73 = vmatprep.subr.mxu0 0.0
    %74 = vmatpush1.msra.mxu0 0.0
    %75 = vmatprep.subr.mxu0 0.0
    %76 = vmatpush1.msra.mxu0 0.0
    %77 = vmatprep.subr.mxu0 0.0
    %78 = vmatpush1.msra.mxu0 0.0
    %79 = vmatprep.subr.mxu0 0.0
    %80 = vmatpush1.msra.mxu0 0.0
    %81 = vmatprep.subr.mxu0 0.0
    %82 = vmatpush1.msra.mxu0 0.0
    %83 = vmatprep.subr.mxu0 0.0
    %84 = vmatpush1.msra.mxu0 0.0
    %85 = vmatprep.subr.mxu0 0.0
    %86 = vmatpush1.msra.mxu0 0.0
    %87 = vmatprep.subr.mxu0 0.0
    %88 = vmatpush1.msra.mxu0 0.0
    %89 = vmatprep.subr.mxu0 0.0
    %90 = vmatpush1.msra.mxu0 0.0
    %91 = vmatprep.subr.mxu0 0.0
    %92 = vmatpush1.msra.mxu0 0.0
    %93 = vmatprep.subr.mxu0 0.0
    %94 = vmatpush1.msra.mxu0 0.0
    %95 = vmatprep.subr.mxu0 0.0
    %96 = vmatpush1.msra.mxu0 0.0
    %97 = vmatprep.subr.mxu0 0.0
    %98 = vmatpush1.msra.mxu0 0.0
    %99 = vmatprep.subr.mxu0 0.0
    %100 = vmatpush1.msra.mxu0 0.0
    %101 = vmatprep.subr.mxu0 0.0
    %102 = vmatpush1.msra.mxu0 0.0
    %103 = vmatprep.subr.mxu0 0.0
    %104 = vmatpush1.msra.mxu0 0.0
    %105 = vmatprep.mubr.f32.mxu0 0.0
    %106 = vmatmul.mubr.f32.gmra.mrb[0].mxu0 %v36
    %v107 = vpop.f32.mrb[0].mxu0
    %v108 = vadd.f32 %v32, %v107
    %v109 = vpop.f32.mrb[0].mxu0
    %110 = vmatprep.mubr.f32.mxu0 0.0
    %111 = vmatmul.mubr.f32.gmra.mrb[0].mxu0 %v39
    %v112 = vpop.f32.mrb[0].mxu0
    %v113 = vadd.f32 %v32, %v112
    %v114 = vpop.f32.mrb[0].mxu0
    %115 = vdwg.mxu0
    %v116 = vmax.f32 %v108, 0.0
    %v117 = vmax.f32 %v113, 0.0
    %v118 = vld [vmem:[%s3] sm:$0xff]
    %v119 = vld [vmem:[%s3 + $0x8] sm:$0xff]
    %v120 = vld [vmem:[%s3 + $0x10] sm:$0xff]
    %v121 = vld [vmem:[%s3 + $0x18] sm:$0xff]
    %v122 = vld [vmem:[%s3 + $0x20] sm:$0xff]
    %v123 = vld [vmem:[%s3 + $0x28] sm:$0xff]
    %v124 = vld [vmem:[%s3 + $0x30] sm:$0xff]
    %v125 = vld [vmem:[%s3 + $0x38] sm:$0xff]
    %v126 = vld [vmem:[%s3 + $0x40] sm:$0xff]
    %v127 = vld [vmem:[%s3 + $0x48] sm:$0xff]
    %v128 = vld [vmem:[%s3 + $0x50] sm:$0xff]
    %v129 = vld [vmem:[%s3 + $0x58] sm:$0xff]
    %v130 = vld [vmem:[%s3 + $0x60] sm:$0xff]
    %v131 = vld [vmem:[%s3 + $0x68] sm:$0xff]
    %v132 = vld [vmem:[%s3 + $0x70] sm:$0xff]
    %v133 = vld [vmem:[%s3 + $0x78] sm:$0xff]
    %v134 = vld [vmem:[%s4] sm:$0x1]
    %v136 = vlaneseq
    %v137 = vshrl.u32 %v136, 7
    %v138 = vsub.s32 0, %v137
    %v139 = vrot.slane %v134, %v138
    %141 = vmatprep.subr.mxu0 0.0
    %142 = vmatpush1.msra.mxu0 %v118
    %143 = vmatprep.subr.mxu0 0.0
    %144 = vmatpush1.msra.mxu0 %v119
    %145 = vmatprep.subr.mxu0 0.0
    %146 = vmatpush1.msra.mxu0 %v120
    %147 = vmatprep.subr.mxu0 0.0
    %148 = vmatpush1.msra.mxu0 %v121
    %149 = vmatprep.subr.mxu0 0.0
    %150 = vmatpush1.msra.mxu0 %v122
    %151 = vmatprep.subr.mxu0 0.0
    %152 = vmatpush1.msra.mxu0 %v123
    %153 = vmatprep.subr.mxu0 0.0
    %154 = vmatpush1.msra.mxu0 %v124
    %155 = vmatprep.subr.mxu0 0.0
    %156 = vmatpush1.msra.mxu0 %v125
    %157 = vmatprep.subr.mxu0 0.0
    %158 = vmatpush1.msra.mxu0 %v126
    %159 = vmatprep.subr.mxu0 0.0
    %160 = vmatpush1.msra.mxu0 %v127
    %161 = vmatprep.subr.mxu0 0.0
    %162 = vmatpush1.msra.mxu0 %v128
    %163 = vmatprep.subr.mxu0 0.0
    %164 = vmatpush1.msra.mxu0 %v129
    %165 = vmatprep.subr.mxu0 0.0
    %166 = vmatpush1.msra.mxu0 %v130
    %167 = vmatprep.subr.mxu0 0.0
    %168 = vmatpush1.msra.mxu0 %v131
    %169 = vmatprep.subr.mxu0 0.0
    %170 = vmatpush1.msra.mxu0 %v132
    %171 = vmatprep.subr.mxu0 0.0
    %172 = vmatpush1.msra.mxu0 %v133
    %173 = vmatprep.subr.mxu0 0.0
    %174 = vmatpush1.msra.mxu0 0.0
    %175 = vmatprep.subr.mxu0 0.0
    %176 = vmatpush1.msra.mxu0 0.0
    %177 = vmatprep.subr.mxu0 0.0
    %178 = vmatpush1.msra.mxu0 0.0
    %179 = vmatprep.subr.mxu0 0.0
    %180 = vmatpush1.msra.mxu0 0.0
    %181 = vmatprep.subr.mxu0 0.0
    %182 = vmatpush1.msra.mxu0 0.0
    %183 = vmatprep.subr.mxu0 0.0
    %184 = vmatpush1.msra.mxu0 0.0
    %185 = vmatprep.subr.mxu0 0.0
    %186 = vmatpush1.msra.mxu0 0.0
    %187 = vmatprep.subr.mxu0 0.0
    %188 = vmatpush1.msra.mxu0 0.0
    %189 = vmatprep.subr.mxu0 0.0
    %190 = vmatpush1.msra.mxu0 0.0
    %191 = vmatprep.subr.mxu0 0.0
    %192 = vmatpush1.msra.mxu0 0.0
    %193 = vmatprep.subr.mxu0 0.0
    %194 = vmatpush1.msra.mxu0 0.0
    %195 = vmatprep.subr.mxu0 0.0
    %196 = vmatpush1.msra.mxu0 0.0
    %197 = vmatprep.subr.mxu0 0.0
    %198 = vmatpush1.msra.mxu0 0.0
    %199 = vmatprep.subr.mxu0 0.0
    %200 = vmatpush1.msra.mxu0 0.0
    %201 = vmatprep.subr.mxu0 0.0
    %202 = vmatpush1.msra.mxu0 0.0
    %203 = vmatprep.subr.mxu0 0.0
    %204 = vmatpush1.msra.mxu0 0.0
    %205 = vmatprep.mubr.f32.mxu0 0.0
    %206 = vmatmul.mubr.f32.gmra.mrb[0].mxu0 %v116
    %v207 = vpop.f32.mrb[0].mxu0
    %v208 = vadd.f32 %v139, %v207
    %v209 = vpop.f32.mrb[0].mxu0
    %210 = vmatprep.mubr.f32.mxu0 0.0
    %211 = vmatmul.mubr.f32.gmra.mrb[0].mxu0 %v117
    %v212 = vpop.f32.mrb[0].mxu0
    %v213 = vadd.f32 %v139, %v212
    %v214 = vpop.f32.mrb[0].mxu0
    %215 = vdwg.mxu0
    %vm216 = vcmask 105472
    %217 = vst.msk [vmem:[#allocation2] sm:$0xff] %vm216, %v208
    %218 = vst.msk [vmem:[#allocation2 + $0x8] sm:$0xff] %vm216, %v213
    // Predicated region
    $region22: #{tpu_custom_call.1} parent=1 // pred_check
      _
    $region23: #{tpu_custom_call.1} parent=1 // pred_check_branch
      %220 = sbr.rel (0) target = $region25
    $region24: #{tpu_custom_call.1} parent=1 // pred_region
      %s222 = ssub.s32 256, 256
      %223 = vsyncadd [#allocation3], %s222
      %s224 = sshll.u32 [#allocation2], 4
      %s225 = int_to_ptr.vmem [resolvable:$true] %s224
      %230 = dma.vmem_to_hbm [thread:$0]  %s225, 256, %s5, [#allocation3], 128, 128, 8
    $region25: #{tpu_custom_call.1} parent=1 // pred_fallthru
      _
    // Predicated region
    $region26: #{tpu_custom_call.1} parent=1 // pred_check
      _
    $region27: #{tpu_custom_call.1} parent=1 // pred_check_branch
      %232 = sbr.rel (0) target = $region29
    $region28: #{tpu_custom_call.1} parent=1 // pred_region
      %233 = dma.done [#allocation3], 256
    $region29: #{tpu_custom_call.1} parent=1 // pred_fallthru
      _
    %234 = vsyncpa [#allocation3], 1

</llo_original>
